<compile_context>
chip_gen: v7x
topology: tpu7x:2x2x1
jax: 0.10.0
libtpu: 0.0.40
codegen_flags: <defaults>
</compile_context>

<pallas_src>
import functools

import jax
import jax.numpy as jnp
from jax.experimental import pallas as pl
from jax.experimental.pallas import tpu as pltpu

HIDDEN = 32
GATE = 2 * HIDDEN  # 64 packed gate columns: [:32] -> Z, [32:] -> H~


# --------------------------------------------------------------------------- #
# One-time weight packing (hoisted out of the forward hot path)
# --------------------------------------------------------------------------- #
def pack_params(params, node_features):
    """Fold + pack all weights into a single (F+2, 64) f32 array.

    rows 0..F-1 : folded gate weights  [ (Wz[0]+Wz[1]) | (Wh[0]+Wh[1]) ][:F, :]
    row  F      : packed gate bias     [ bz | bh ]
    row  F+1    : Linear(32,1) weight in lanes 0:32, its bias in lane 32, zeros after
    (w_r / b_r are mathematically dead for H0 == 0 and are not packed.)
    """
    f = node_features
    w_z = (params["w_z"][0] + params["w_z"][1])[:f, :]                   # (F, 32)
    w_h = (params["w_h"][0] + params["w_h"][1])[:f, :]                   # (F, 32)
    w_gate = jnp.concatenate([w_z, w_h], axis=1)                         # (F, 64)
    b_gate = jnp.concatenate([params["b_z"], params["b_h"]]).reshape(1, GATE)
    lin_row = jnp.concatenate(
        [params["w_lin"].reshape(1, HIDDEN),
         params["b_lin"].reshape(1, 1),
         jnp.zeros((1, HIDDEN - 1), jnp.float32)], axis=1)               # (1, 64)
    return jnp.concatenate([w_gate, b_gate, lin_row], axis=0)            # (F+2, 64)


# --------------------------------------------------------------------------- #
# Fused cell kernel (shared by the single-step and the T-fused entry points)
# --------------------------------------------------------------------------- #
def _dcrnn_cell_kernel(x_ref, w_ref, out_ref, *, f):
    x = x_ref[...]                                       # (N, F)
    w = w_ref[...]                                       # (F+2, 64) resident in VMEM

    w_gate = w[:f, :]                                    # (F, 64)
    b_gate = w[f:f + 1, :]                               # (1, 64)
    w_lin = w[f + 1:f + 2, :HIDDEN]                      # (1, 32)
    b_lin = w[f + 1:f + 2, HIDDEN:HIDDEN + 1]            # (1, 1)

    # One fused gate matmul: (N, F) @ (F, 64); cols 0:32 -> Z, 32:64 -> H~
    g = jnp.dot(x, w_gate, preferred_element_type=jnp.float32) + b_gate
    z = jax.nn.sigmoid(g[:, :HIDDEN])
    h_tilde = jnp.tanh(g[:, HIDDEN:])

    # H = (1 - Z) * H~   (Z*H0 term vanishes for H0 == 0), then ReLU
    h = jnp.maximum((1.0 - z) * h_tilde, 0.0)            # (N, 32)

    # Linear(32 -> 1) as a lane reduction (avoids a 1-column MXU matmul)
    out_ref[...] = jnp.sum(h * w_lin, axis=-1, keepdims=True) + b_lin


# --------------------------------------------------------------------------- #
# Single-step forward (matches the PyTorch module's forward exactly)
# --------------------------------------------------------------------------- #
def dcrnn_recurrent_gcn(x, edge_index, edge_weight, packed_w):
    """Pallas forward of DCRNN_RecurrentGCN.  x: (N, F) f32 -> (N, 1) f32."""
    del edge_index, edge_weight  # unused for K == 1 (no diffusion term in DConv)
    n, f = x.shape
    kernel = functools.partial(_dcrnn_cell_kernel, f=f)
    return pl.pallas_call(
        kernel,
        out_shape=jax.ShapeDtypeStruct((n, 1), jnp.float32),
        # No grid: whole arrays in VMEM, no pipelining scaffolding.
        in_specs=[pl.BlockSpec(memory_space=pltpu.MemorySpace.VMEM),
                  pl.BlockSpec(memory_space=pltpu.MemorySpace.VMEM)],
        out_specs=pl.BlockSpec(memory_space=pltpu.MemorySpace.VMEM),
    )(x, packed_w)


# --------------------------------------------------------------------------- #
# T-fused forward: T independent snapshots in one pallas_call (one dispatch,
# weights loaded to VMEM once via a constant index_map, X streamed per step).
# Each step uses H0 == 0 exactly as the module does on every call.
# --------------------------------------------------------------------------- #
def dcrnn_recurrent_gcn_sequence(x_seq, edge_index, edge_weight, packed_w):
    """x_seq: (T, N, F) f32 -> (T, N, 1) f32  (T independent module forwards)."""
    del edge_index, edge_weight  # unused for K == 1
    t, n, f = x_seq.shape
    kernel = functools.partial(_dcrnn_cell_kernel, f=f)
    return pl.pallas_call(
        kernel,
        out_shape=jax.ShapeDtypeStruct((t, n, 1), jnp.float32),
        grid=(t,),
        in_specs=[
            # per-step X block (leading dim squeezed -> kernel sees (N, F))
            pl.BlockSpec((None, n, f), lambda i: (i, 0, 0)),
            # packed weights: constant block index -> DMA'd to VMEM once, then resident
            pl.BlockSpec((f + 2, GATE), lambda i: (0, 0)),
        ],
        out_specs=pl.BlockSpec((None, n, 1), lambda i: (i, 0, 0)),
        compiler_params=pltpu.CompilerParams(
            # Steps are independent (H0 == 0 each step) -> parallel; lets v7x megacore
            # split the T axis across its two TensorCores.
            dimension_semantics=("parallel",)),
    )(x_seq, packed_w)


# --------------------------------------------------------------------------- #
# Parameter init (matches the PyTorch module's parameter shapes) + reference
# --------------------------------------------------------------------------- #
def init_params(key, node_features):
    """Each DConv holds weight (2, K=1, in_ch, out_ch) (K squeezed here) and bias."""
    in_dim = node_features + HIDDEN
    ks = jax.random.split(key, 8)

    def glorot(k, shape):
        fan_in, fan_out = shape[-2], shape[-1]
        lim = (6.0 / (fan_in + fan_out)) ** 0.5
        return jax.random.uniform(k, shape, jnp.float32, -lim, lim)

    lin_lim = 1.0 / (HIDDEN ** 0.5)  # torch.nn.Linear default init bounds
    return {
        "w_z": glorot(ks[0], (2, in_dim, HIDDEN)),
        "b_z": jnp.zeros((HIDDEN,), jnp.float32),
        "w_r": glorot(ks[1], (2, in_dim, HIDDEN)),
        "b_r": jnp.zeros((HIDDEN,), jnp.float32),
        "w_h": glorot(ks[2], (2, in_dim, HIDDEN)),
        "b_h": jnp.zeros((HIDDEN,), jnp.float32),
        "w_lin": jax.random.uniform(ks[3], (HIDDEN, 1), jnp.float32, -lin_lim, lin_lim),
        "b_lin": jax.random.uniform(ks[4], (1,), jnp.float32, -lin_lim, lin_lim),
    }


def _reference_forward(x, params):
    """Pure-JAX reference of the FULL (unsimplified) forward pass (K=1, H0=0)."""
    n = x.shape[0]
    h0 = jnp.zeros((n, HIDDEN), x.dtype)
    xz = jnp.concatenate([x, h0], axis=1)
    z = jax.nn.sigmoid(xz @ params["w_z"][0] + xz @ params["w_z"][1] + params["b_z"])
    r = jax.nn.sigmoid(xz @ params["w_r"][0] + xz @ params["w_r"][1] + params["b_r"])
    xh = jnp.concatenate([x, h0 * r], axis=1)
    h_tilde = jnp.tanh(xh @ params["w_h"][0] + xh @ params["w_h"][1] + params["b_h"])
    h = z * h0 + (1.0 - z) * h_tilde
    h = jax.nn.relu(h)
    return h @ params["w_lin"] + params["b_lin"]


if __name__ == "__main__":
    key = jax.random.PRNGKey(0)
    k_x, k_w, k_ew, k_seq = jax.random.split(key, 4)

    N, F_IN, T = 20, 4, 8                   # Chickenpox: 20 counties, 4 lag features
    x = jax.random.normal(k_x, (N, F_IN), jnp.float32)
    x_seq = jax.random.normal(k_seq, (T, N, F_IN), jnp.float32)

    # Simple directed ring graph (accepted by the API; unused in compute for K=1).
    src = jnp.arange(N, dtype=jnp.int32)
    dst = (src + 1) % N
    edge_index = jnp.stack([jnp.concatenate([src, dst]),
                            jnp.concatenate([dst, src])], axis=0)   # (2, 2N)
    edge_weight = jax.random.uniform(k_ew, (2 * N,), jnp.float32, 0.1, 1.0)

    params = init_params(k_w, F_IN)
    packed_w = pack_params(params, F_IN)    # packed ONCE, off the per-forward hot path

    # --- single-step path (module-equivalent forward) ---
    out = jax.block_until_ready(
        dcrnn_recurrent_gcn(x, edge_index, edge_weight, packed_w))
    ref = _reference_forward(x, params)
    assert out.shape == (N, 1)
    assert jnp.allclose(out, ref, atol=1e-5, rtol=1e-5), "single-step mismatch vs ref"

    # --- T-fused path (T independent module forwards in one pallas_call) ---
    out_seq = jax.block_until_ready(
        dcrnn_recurrent_gcn_sequence(x_seq, edge_index, edge_weight, packed_w))
    ref_seq = jnp.stack([_reference_forward(x_seq[t], params) for t in range(T)])
    assert out_seq.shape == (T, N, 1)
    assert jnp.allclose(out_seq, ref_seq, atol=1e-5, rtol=1e-5), "sequence mismatch vs ref"

    print("KERNEL_OK")
</pallas_src>

<mosaic_0001>
module attributes {stable_mosaic.version = 11 : i64} {
  func.func @_dcrnn_cell_kernel(%arg0: memref<20x4xf32, #tpu.memory_space<vmem>>, %arg1: memref<6x64xf32, #tpu.memory_space<vmem>>, %arg2: memref<20x1xf32, #tpu.memory_space<vmem>>) attributes {dimension_semantics = [], scalar_prefetch = 0 : i64, scratch_operands = 0 : i64, tpu.core_type = #tpu.core_type<tc>} {
    %c0 = arith.constant 0 : index
    %c0_0 = arith.constant 0 : index
    %0 = vector.load %arg0[%c0, %c0_0] : memref<20x4xf32, #tpu.memory_space<vmem>>, vector<20x4xf32>
    %c0_1 = arith.constant 0 : index
    %c0_2 = arith.constant 0 : index
    %1 = vector.load %arg1[%c0_1, %c0_2] : memref<6x64xf32, #tpu.memory_space<vmem>>, vector<6x64xf32>
    %2 = vector.extract_strided_slice %1 {offsets = [0, 0], sizes = [4, 64], strides = [1, 1]} : vector<6x64xf32> to vector<4x64xf32>
    %3 = vector.extract_strided_slice %1 {offsets = [4, 0], sizes = [1, 64], strides = [1, 1]} : vector<6x64xf32> to vector<1x64xf32>
    %4 = vector.extract_strided_slice %1 {offsets = [5, 0], sizes = [1, 32], strides = [1, 1]} : vector<6x64xf32> to vector<1x32xf32>
    %5 = vector.extract_strided_slice %1 {offsets = [5, 32], sizes = [1, 1], strides = [1, 1]} : vector<6x64xf32> to vector<1x1xf32>
    %cst = arith.constant dense<0.000000e+00> : vector<20x64xf32>
    %6 = tpu.matmul %0, %2, %cst {dimension_numbers = #tpu.dot_dimension_numbers<[1], [0], [0], [1], [0, 0, 1, 1], [], []>} : vector<20x4xf32>, vector<4x64xf32>, vector<20x64xf32> -> vector<20x64xf32>
    %7 = vector.broadcast %3 : vector<1x64xf32> to vector<20x64xf32>
    %8 = arith.addf %6, %7 : vector<20x64xf32>
    %9 = vector.extract_strided_slice %8 {offsets = [0, 0], sizes = [20, 32], strides = [1, 1]} : vector<20x64xf32> to vector<20x32xf32>
    %10 = arith.negf %9 : vector<20x32xf32>
    %11 = math.exp %10 : vector<20x32xf32>
    %cst_3 = arith.constant 1.000000e+00 : f32
    %12 = vector.broadcast %cst_3 : f32 to vector<20x32xf32>
    %13 = arith.addf %12, %11 : vector<20x32xf32>
    %14 = arith.divf %12, %13 : vector<20x32xf32>
    %15 = vector.extract_strided_slice %8 {offsets = [0, 32], sizes = [20, 32], strides = [1, 1]} : vector<20x64xf32> to vector<20x32xf32>
    %16 = math.tanh %15 : vector<20x32xf32>
    %cst_4 = arith.constant 1.000000e+00 : f32
    %17 = vector.broadcast %cst_4 : f32 to vector<20x32xf32>
    %18 = arith.subf %17, %14 : vector<20x32xf32>
    %19 = arith.mulf %18, %16 : vector<20x32xf32>
    %cst_5 = arith.constant 0.000000e+00 : f32
    %20 = vector.broadcast %cst_5 : f32 to vector<20x32xf32>
    %21 = arith.maximumf %19, %20 : vector<20x32xf32>
    %22 = vector.broadcast %4 : vector<1x32xf32> to vector<20x32xf32>
    %23 = arith.mulf %21, %22 : vector<20x32xf32>
    %cst_6 = arith.constant dense<0.000000e+00> : vector<20xf32>
    %24 = vector.multi_reduction <add>, %23, %cst_6 [1] : vector<20x32xf32> to vector<20xf32>
    %25 = vector.shape_cast %24 : vector<20xf32> to vector<20x1xf32>
    %26 = vector.broadcast %5 : vector<1x1xf32> to vector<20x1xf32>
    %27 = arith.addf %25, %26 : vector<20x1xf32>
    %c0_7 = arith.constant 0 : index
    %c0_8 = arith.constant 0 : index
    %28 = vector.load %arg2[%c0_7, %c0_8] : memref<20x1xf32, #tpu.memory_space<vmem>>, vector<20x1xf32>
    tpu.vector_store %arg2[%c0_7, %c0_8], %27 {strides = array<i32>} : memref<20x1xf32, #tpu.memory_space<vmem>>, vector<20x1xf32>,
    return
  }
}

</mosaic_0001>

<llo_original>
// kernel: tpu_custom_call.1
$region0: #{tpu_custom_call.1}
  #allocation0 [shape = 'u32[]', space=smem, size = 0x4, offset = 0x4, fixed_abs, tag = 'smem constant byte address 0x4 - core index']
  #allocation1 [shape = 'u32[144,128]{1,0:T(1,128)}', space=vmem, size = 0x12000, scoped, tag = 'internal scratch']
  %s0 = inlined_call_operand.vmem [shape: f32[20,4], index: 0, kind: input, shape index: {}]
  %s1 = inlined_call_operand.vmem [shape: f32[6,64], index: 1, kind: input, shape index: {}]
  %s2 = inlined_call_operand.vmem [shape: f32[20,1], index: 2, kind: output, shape index: {}]
  %s3 = sld [smem:[#allocation0]]
  $region18: #{tpu_custom_call.1} parent=0
    _
  %s5 = ssub.s32 1, %s3
  %s6 = scalar_select 0, %s5, %s3
  // Predicated region
  $region2: #{tpu_custom_call.1} parent=0 // pred_check
    _
  $region3: #{tpu_custom_call.1} parent=0 // pred_check_branch
    %8 = sbr.rel (0) target = $region5
  $region4: #{tpu_custom_call.1} parent=0 // pred_region
    _
  $region5: #{tpu_custom_call.1} parent=0 // pred_fallthru
    _
  // Predicated region
  $region6: #{tpu_custom_call.1} parent=0 // pred_check
    _
  $region7: #{tpu_custom_call.1} parent=0 // pred_check_branch
    %10 = sbr.rel (0) target = $region9
  $region8: #{tpu_custom_call.1} parent=0 // pred_region
    _
  $region9: #{tpu_custom_call.1} parent=0 // pred_fallthru
    _
  %v11 = vld [vmem:[%s0] sm:$0xff]
  %v12 = vld [vmem:[%s0 + $0x8] sm:$0xff]
  %v13 = vld [vmem:[%s0 + $0x10] sm:$0xf]
  %v14 = vld [vmem:[%s1] sm:$0x3f]
  %v15 = vlaneseq
  %v16 = vshrl.u32 %v15, 7
  %v17 = vsub.s32 4, %v16
  %v18 = vrot.slane %v14, %v17
  %vm19 = vcmask 31744
  %v21 = vsel %vm19, %v11, 0
  %v24 = vsel %vm19, %v12, 0
  %v27 = vsel %vm19, %v13, 0
  %vm29 = vcmask 1043456
  %v31 = vsel %vm29, %v14, 0
  %33 = vmatprep.subr.mxu0 0.0
  %34 = vmatpush1.msra.mxu0 %v31
  %35 = vmatprep.subr.mxu0 0.0
  %36 = vmatpush1.msra.mxu0 0.0
  %37 = vmatprep.subr.mxu0 0.0
  %38 = vmatpush1.msra.mxu0 0.0
  %39 = vmatprep.subr.mxu0 0.0
  %40 = vmatpush1.msra.mxu0 0.0
  %41 = vmatprep.subr.mxu0 0.0
  %42 = vmatpush1.msra.mxu0 0.0
  %43 = vmatprep.subr.mxu0 0.0
  %44 = vmatpush1.msra.mxu0 0.0
  %45 = vmatprep.subr.mxu0 0.0
  %46 = vmatpush1.msra.mxu0 0.0
  %47 = vmatprep.subr.mxu0 0.0
  %48 = vmatpush1.msra.mxu0 0.0
  %49 = vmatprep.subr.mxu0 0.0
  %50 = vmatpush1.msra.mxu0 0.0
  %51 = vmatprep.subr.mxu0 0.0
  %52 = vmatpush1.msra.mxu0 0.0
  %53 = vmatprep.subr.mxu0 0.0
  %54 = vmatpush1.msra.mxu0 0.0
  %55 = vmatprep.subr.mxu0 0.0
  %56 = vmatpush1.msra.mxu0 0.0
  %57 = vmatprep.subr.mxu0 0.0
  %58 = vmatpush1.msra.mxu0 0.0
  %59 = vmatprep.subr.mxu0 0.0
  %60 = vmatpush1.msra.mxu0 0.0
  %61 = vmatprep.subr.mxu0 0.0
  %62 = vmatpush1.msra.mxu0 0.0
  %63 = vmatprep.subr.mxu0 0.0
  %64 = vmatpush1.msra.mxu0 0.0
  %65 = vmatprep.subr.mxu0 0.0
  %66 = vmatpush1.msra.mxu0 0.0
  %67 = vmatprep.subr.mxu0 0.0
  %68 = vmatpush1.msra.mxu0 0.0
  %69 = vmatprep.subr.mxu0 0.0
  %70 = vmatpush1.msra.mxu0 0.0
  %71 = vmatprep.subr.mxu0 0.0
  %72 = vmatpush1.msra.mxu0 0.0
  %73 = vmatprep.subr.mxu0 0.0
  %74 = vmatpush1.msra.mxu0 0.0
  %75 = vmatprep.subr.mxu0 0.0
  %76 = vmatpush1.msra.mxu0 0.0
  %77 = vmatprep.subr.mxu0 0.0
  %78 = vmatpush1.msra.mxu0 0.0
  %79 = vmatprep.subr.mxu0 0.0
  %80 = vmatpush1.msra.mxu0 0.0
  %81 = vmatprep.subr.mxu0 0.0
  %82 = vmatpush1.msra.mxu0 0.0
  %83 = vmatprep.subr.mxu0 0.0
  %84 = vmatpush1.msra.mxu0 0.0
  %85 = vmatprep.subr.mxu0 0.0
  %86 = vmatpush1.msra.mxu0 0.0
  %87 = vmatprep.subr.mxu0 0.0
  %88 = vmatpush1.msra.mxu0 0.0
  %89 = vmatprep.subr.mxu0 0.0
  %90 = vmatpush1.msra.mxu0 0.0
  %91 = vmatprep.subr.mxu0 0.0
  %92 = vmatpush1.msra.mxu0 0.0
  %93 = vmatprep.subr.mxu0 0.0
  %94 = vmatpush1.msra.mxu0 0.0
  %95 = vmatprep.subr.mxu0 0.0
  %96 = vmatpush1.msra.mxu0 0.0
  %97 = vmatprep.mubr.f32.mxu0 0.0
  %98 = vmatmul.mubr.f32.gmra.mrb[0].mxu0 %v21
  %v99 = vpop.f32.mrb[0].mxu0
  %v100 = vadd.f32 %v18, %v99
  %v101 = vpop.f32.mrb[0].mxu0
  %102 = vmatprep.mubr.f32.mxu0 0.0
  %103 = vmatmul.mubr.f32.gmra.mrb[0].mxu0 %v24
  %v104 = vpop.f32.mrb[0].mxu0
  %v105 = vadd.f32 %v18, %v104
  %v106 = vpop.f32.mrb[0].mxu0
  %107 = vmatprep.mubr.f32.mxu0 0.0
  %108 = vmatmul.mubr.f32.gmra.mrb[0].mxu0 %v27
  %v109 = vpop.f32.mrb[0].mxu0
  %v110 = vadd.f32 %v18, %v109
  %v111 = vpop.f32.mrb[0].mxu0
  %112 = vdwg.mxu0
  %v113 = vxor.u32 %v100, 2147483648
  %v114 = vxor.u32 %v105, 2147483648
  %v115 = vxor.u32 %v110, 2147483648
  %v116 = vmul.f32 %v113, 1.442695
  %v117 = vpow.pop %v116
  %v118 = vmul.f32 %v114, 1.442695
  %v119 = vpow.pop %v118
  %v120 = vmul.f32 %v115, 1.442695
  %v121 = vpow.pop %v120
  %v122 = vadd.f32 %v117, 1.0
  %v123 = vadd.f32 %v119, 1.0
  %v124 = vadd.f32 %v121, 1.0
  %v125 = vrcp.pop %v122
  %v126 = vmul.f32 1.0, %v125
  %v127 = vrcp.pop %v123
  %v128 = vmul.f32 1.0, %v127
  %v129 = vrcp.pop %v124
  %v130 = vmul.f32 1.0, %v129
  %v131 = vtanh.pop %v100
  %v132 = vtanh.pop %v105
  %v133 = vtanh.pop %v110
  %v134 = vsub.f32 1.0, %v126
  %v135 = vsub.f32 1.0, %v128
  %v136 = vsub.f32 1.0, %v130
  %140 = vrot.lane.b32.xlu0 %v131, 96
  %v141 = vpop.permute.xlu0 %140
  %142 = vrot.lane.b32.xlu0 %v132, 96
  %v143 = vpop.permute.xlu0 %142
  %144 = vrot.lane.b32.xlu0 %v133, 96
  %v145 = vpop.permute.xlu0 %144
  %v149 = vmul.f32 %v134, %v141
  %v150 = vmul.f32 %v135, %v143
  %v151 = vmul.f32 %v136, %v145
  %v152 = vmax.f32 %v149, 0.0
  %v153 = vmax.f32 %v150, 0.0
  %v154 = vmax.f32 %v151, 0.0
  %v155 = vlaneseq
  %v156 = vshrl.u32 %v155, 7
  %v157 = vsub.s32 5, %v156
  %v158 = vrot.slane %v14, %v157
  %v159 = vmul.f32 %v152, %v158
  %v160 = vmul.f32 %v153, %v158
  %v161 = vmul.f32 %v154, %v158
  %vm162 = vcmask 261120
  %v163 = vsel %vm162, %v159, 0.0
  %164 = vadd.xlane.f32.xlu0 %v163
  %v165 = vpop.xlane.xlu0 %164
  %v166 = vsel %vm162, %v160, 0.0
  %167 = vadd.xlane.f32.xlu0 %v166
  %v168 = vpop.xlane.xlu0 %167
  %vm169 = vcmask 257024
  %v170 = vsel %vm169, %v161, 0.0
  %171 = vadd.xlane.f32.xlu0 %v170
  %v172 = vpop.xlane.xlu0 %171
  %v173 = vadd.f32 %v165, %v158
  %v174 = vadd.f32 %v168, %v158
  %v175 = vadd.f32 %v172, %v158
  %179 = vrot.lane.b32.xlu0 %v173, 96
  %v180 = vpop.permute.xlu0 %179
  %181 = vrot.lane.b32.xlu0 %v174, 96
  %v182 = vpop.permute.xlu0 %181
  %183 = vrot.lane.b32.xlu0 %v175, 96
  %v184 = vpop.permute.xlu0 %183
  %vm188 = vcmask 7168
  %189 = vst.msk [vmem:[%s2] sm:$0xff] %vm188, %v180
  %190 = vst.msk [vmem:[%s2 + $0x8] sm:$0xff] %vm188, %v182
  %vm191 = vcmask 3072
  %192 = vst.msk [vmem:[%s2 + $0x10] sm:$0xf] %vm191, %v184
  // Predicated region
  $region10: #{tpu_custom_call.1} parent=0 // pred_check
    _
  $region11: #{tpu_custom_call.1} parent=0 // pred_check_branch
    %194 = sbr.rel (0) target = $region13
  $region12: #{tpu_custom_call.1} parent=0 // pred_region
    _
  $region13: #{tpu_custom_call.1} parent=0 // pred_fallthru
    _
  // Predicated region
  $region14: #{tpu_custom_call.1} parent=0 // pred_check
    _
  $region15: #{tpu_custom_call.1} parent=0 // pred_check_branch
    %196 = sbr.rel (0) target = $region17
  $region16: #{tpu_custom_call.1} parent=0 // pred_region
    _
  $region17: #{tpu_custom_call.1} parent=0 // pred_fallthru
    _

</llo_original>
